<compile_context>
chip_gen: v7x
topology: tpu7x:2x2x1
jax: 0.10.0
libtpu: 0.0.40
codegen_flags: <defaults>
</compile_context>

<pallas_src>
import functools
import math

import jax
import jax.numpy as jnp
import numpy as np
from jax import lax
from jax.experimental import pallas as pl
from jax.experimental.pallas import tpu as pltpu


# ----------------------------------------------------------------------------
# Pallas kernel
# ----------------------------------------------------------------------------
def _egnn_kernel(x_ref, ewave_ref, w1_ref, alr_ref, w2_ref, o_ref, *,
                 edge_channels, mxu_dtype, approx_recip):
    # x_ref    : (Bt, N, Cin)
    # ewave_ref: (P, N, N)        pre-normalized edge features, [p, i, j]
    # w1_ref   : (Cin, Cout)
    # alr_ref  : (Cout, 2)        [alpha_l | alpha_r]
    # w2_ref   : (P, Cout, Cout)  W2 split per edge channel
    # o_ref    : (Bt, N, Cout)
    Bt, N, Cin = x_ref.shape
    Cout = w1_ref.shape[1]

    # H = X @ W1 over the whole batch tile (M = Bt*N rows on the MXU).
    x2d = x_ref[...].reshape(Bt * N, Cin)
    h2d = jnp.dot(x2d, w1_ref[...], preferred_element_type=jnp.float32)   # (Bt*N, Cout)

    # Attention logits: one fused (Cout, 2) projection instead of two 1-lane dots.
    att = jnp.dot(h2d, alr_ref[...], preferred_element_type=jnp.float32)  # (Bt*N, 2)
    att = att.reshape(Bt, N, 2)
    att_l = att[:, :, 0:1]                                                # (Bt, N, 1)
    att_r = att[:, :, 1:2]                                                # (Bt, N, 1)
    # s[b, i, j] = att_l[b, i] * att_r[b, j]  (batched rank-1 outer product).
    s = lax.dot_general(att_l, att_r,
                        dimension_numbers=(((2,), (2,)), ((0,), (0,))),
                        preferred_element_type=jnp.float32)               # (Bt, N, N)

    # leaky_relu (negative_slope = 0.01, torch default), row-max shift, exp.
    s = jnp.where(s > 0, s, 0.01 * s)
    s = s - jnp.max(s, axis=-1, keepdims=True)   # cancels in row normalization
    e = jnp.exp(s)                                                        # (Bt, N, N)

    h3 = h2d.reshape(Bt, N, Cout)
    h_mm = h3.astype(mxu_dtype)

    acc = jnp.zeros((Bt * N, Cout), jnp.float32)
    for p in range(edge_channels):               # static unroll, P in {1, 3}
        ewave_p = ewave_ref[p]                   # (N, N), precomputed in wrapper
        attn = e * ewave_p[None, :, :]           # (Bt, N, N)
        inv = pl.reciprocal(jnp.sum(attn, axis=-1, keepdims=True),
                            approx=approx_recip)
        attn = attn * inv
        # Neighbor aggregation (dominant FLOP term) on the MXU.
        agg = lax.dot_general(attn.astype(mxu_dtype), h_mm,
                              dimension_numbers=(((2,), (1,)), ((0,), (0,))),
                              preferred_element_type=jnp.float32)         # (Bt, N, Cout)
        # Accumulate directly through the per-channel W2 block: no concatenate.
        acc = acc + jnp.dot(agg.reshape(Bt * N, Cout), w2_ref[p],
                            preferred_element_type=jnp.float32)

    o_ref[...] = acc.reshape(Bt, N, Cout).astype(o_ref.dtype)


# ----------------------------------------------------------------------------
# Wrapper (glue: self-loops, edge normalization, batch tiling, plumbing)
# ----------------------------------------------------------------------------
def _vmem_limit_bytes(bt, N, Cin, Cout, P):
    f32 = 4
    need = (
        2 * bt * N * Cin                                    # X (double buffered)
        + 2 * bt * N * Cout                                 # out (double buffered)
        + 2 * P * N * N                                     # E_wave
        + 2 * (Cin * Cout + 2 * Cout + P * Cout * Cout)     # weights
        + 8 * bt * N * N                                    # s / e / attn temporaries
        + 6 * bt * N * Cout                                 # h / agg / acc
    ) * f32
    est = int(1.5 * need) + (8 << 20)
    return max(32 << 20, min(est, 100 << 20))


def egnn_forward(X, A, w1, alpha, w2, *, out_channels,
                 edge_feature_avalible=False, add_self_loop=True,
                 batch_block=None, mxu_dtype=jnp.float32, approx_recip=False):
    B, N, Cin = X.shape
    Cout = out_channels
    P = 3 if edge_feature_avalible else 1

    adj = A
    if add_self_loop:
        idx = jnp.arange(N)
        adj = adj.at[idx, idx].set(1.0)

    if edge_feature_avalible:
        ehat = jnp.stack([adj, adj.T, adj + adj.T], axis=0)     # (3, N, N) [p, i, j]
    else:
        ehat = adj[None, :, :]                                  # (1, N, N)
    # Batch-invariant edge normalization, hoisted out of the kernel.
    ewave = (ehat / jnp.sum(ehat, axis=-1, keepdims=True)).astype(jnp.float32)

    alpha_lr = jnp.concatenate([alpha[:Cout], alpha[Cout:]], axis=1)  # (Cout, 2)
    w2r = w2.reshape(P, Cout, Cout)

    # Batch tile: aim for ~256 MXU rows per grid step; pad B to a multiple.
    if batch_block is None:
        batch_block = max(1, 256 // max(N, 1))
    bt = max(1, min(batch_block, B))
    B_pad = ((B + bt - 1) // bt) * bt
    Xp = X if B_pad == B else jnp.pad(X, ((0, B_pad - B), (0, 0), (0, 0)))

    kernel = functools.partial(_egnn_kernel, edge_channels=P,
                               mxu_dtype=mxu_dtype, approx_recip=approx_recip)

    out = pl.pallas_call(
        kernel,
        out_shape=jax.ShapeDtypeStruct((B_pad, N, Cout), X.dtype),
        grid_spec=pltpu.PrefetchScalarGridSpec(
            num_scalar_prefetch=0,
            grid=(B_pad // bt,),
            in_specs=[
                pl.BlockSpec((bt, N, Cin), lambda b: (b, 0, 0)),     # X tile
                pl.BlockSpec((P, N, N), lambda b: (0, 0, 0)),        # E_wave (grid-invariant)
                pl.BlockSpec((Cin, Cout), lambda b: (0, 0)),         # W1
                pl.BlockSpec((Cout, 2), lambda b: (0, 0)),           # [alpha_l | alpha_r]
                pl.BlockSpec((P, Cout, Cout), lambda b: (0, 0, 0)),  # W2 per channel
            ],
            out_specs=pl.BlockSpec((bt, N, Cout), lambda b: (b, 0, 0)),
        ),
        compiler_params=pltpu.CompilerParams(
            dimension_semantics=("parallel",),
            vmem_limit_bytes=_vmem_limit_bytes(bt, N, Cin, Cout, P),
        ),
    )(Xp, ewave, w1, alpha_lr, w2r)
    return out[:B] if B_pad != B else out


# ----------------------------------------------------------------------------
# Pure-JAX reference (mirrors the PyTorch forward exactly) for validation
# ----------------------------------------------------------------------------
def egnn_reference(X, A, w1, alpha, w2, *, out_channels,
                   edge_feature_avalible=False, add_self_loop=True):
    B, N, _ = X.shape
    Cout = out_channels
    P = 3 if edge_feature_avalible else 1
    adj = A
    if add_self_loop:
        idx = jnp.arange(N)
        adj = adj.at[idx, idx].set(1.0)
    out = X @ w1
    if edge_feature_avalible:
        ef = jnp.stack([adj, adj.T, adj + adj.T], axis=2)           # (N, N, 3)
    else:
        ef = adj[:, :, None]                                        # (N, N, 1)
    ewave = ef / ef.sum(axis=1)[:, None, :]
    att_l = out @ alpha[:Cout]
    att_r = out @ alpha[Cout:]
    att = jax.nn.leaky_relu(jnp.matmul(att_l, jnp.swapaxes(att_r, 1, 2)), 0.01)
    att = jnp.einsum('bij,ijp->pbij', jnp.exp(att), ewave)
    att = att / att.sum(axis=-1)[..., None]
    o = jnp.einsum('pbij,bjc->bipc', att, out)
    o = o.reshape(B, N, P * Cout)
    return o @ w2


# ----------------------------------------------------------------------------
# Deterministic xavier-uniform init (matches nn.init.xavier_uniform_, gain=1.414)
# ----------------------------------------------------------------------------
def xavier_uniform(key, shape, gain=1.414, dtype=jnp.float32):
    fan_in, fan_out = shape[0], shape[1]
    bound = gain * math.sqrt(6.0 / (fan_in + fan_out))
    return jax.random.uniform(key, shape, dtype, minval=-bound, maxval=bound)


if __name__ == "__main__":
    B, N, Cin, Cout = 3, 16, 8, 32

    key = jax.random.PRNGKey(0)
    kx, ka, k1, k2a, k2b, k3 = jax.random.split(key, 6)

    X = 0.1 * jax.random.normal(kx, (B, N, Cin), dtype=jnp.float32)
    A = jax.random.bernoulli(ka, p=0.3, shape=(N, N)).astype(jnp.float32)

    configs = [
        # (edge_feature_avalible, w2 key, mxu dtype,    approx recip, batch_block, tol)
        (False, k2a, jnp.float32,  False, None, 1e-4),   # exact path
        (True,  k2b, jnp.float32,  False, None, 1e-4),   # exact path, 3 edge channels
        (True,  k2b, jnp.bfloat16, True,  2,    5e-2),   # fast path + batch padding
    ]
    for ef, kw2, mdt, approx, bb, tol in configs:
        P = 3 if ef else 1
        w1 = xavier_uniform(k1, (Cin, Cout))
        w2 = xavier_uniform(kw2, (P * Cout, Cout))
        alpha = xavier_uniform(k3, (2 * Cout, 1))

        out = egnn_forward(X, A, w1, alpha, w2, out_channels=Cout,
                           edge_feature_avalible=ef, batch_block=bb,
                           mxu_dtype=mdt, approx_recip=approx)
        out = jax.block_until_ready(out)

        ref = egnn_reference(X, A, w1, alpha, w2, out_channels=Cout,
                             edge_feature_avalible=ef)
        np.testing.assert_allclose(np.asarray(out), np.asarray(ref),
                                   rtol=tol, atol=tol)

    print("KERNEL_OK")
</pallas_src>

<mosaic_0001>
module attributes {stable_mosaic.version = 11 : i64} {
  func.func @_egnn_kernel(%arg0: i32, %arg1: memref<3x16x8xf32, #tpu.memory_space<vmem>>, %arg2: memref<1x16x16xf32, #tpu.memory_space<vmem>>, %arg3: memref<8x32xf32, #tpu.memory_space<vmem>>, %arg4: memref<32x2xf32, #tpu.memory_space<vmem>>, %arg5: memref<1x32x32xf32, #tpu.memory_space<vmem>>, %arg6: memref<3x16x32xf32, #tpu.memory_space<vmem>>) attributes {dimension_semantics = [#tpu.dimension_semantics<parallel>], iteration_bounds = array<i64: 1>, scalar_prefetch = 0 : i64, scratch_operands = 0 : i64, tpu.core_type = #tpu.core_type<tc>, window_params = [{transform_indices = @transform_0, window_bounds = array<i64: 3, 16, 8>}, {pipeline_mode = #tpu.pipeline_mode<synchronous>, transform_indices = @transform_1, window_bounds = array<i64: 1, 16, 16>}, {pipeline_mode = #tpu.pipeline_mode<synchronous>, transform_indices = @transform_2, window_bounds = array<i64: 8, 32>}, {pipeline_mode = #tpu.pipeline_mode<synchronous>, transform_indices = @transform_3, window_bounds = array<i64: 32, 2>}, {pipeline_mode = #tpu.pipeline_mode<synchronous>, transform_indices = @transform_4, window_bounds = array<i64: 1, 32, 32>}, {transform_indices = @transform_5, window_bounds = array<i64: 3, 16, 32>}]} {
    %c0 = arith.constant 0 : index
    %c0_0 = arith.constant 0 : index
    %c0_1 = arith.constant 0 : index
    %0 = vector.load %arg1[%c0, %c0_0, %c0_1] : memref<3x16x8xf32, #tpu.memory_space<vmem>>, vector<3x16x8xf32>
    %1 = vector.shape_cast %0 : vector<3x16x8xf32> to vector<48x8xf32>
    %c0_2 = arith.constant 0 : index
    %c0_3 = arith.constant 0 : index
    %2 = vector.load %arg3[%c0_2, %c0_3] : memref<8x32xf32, #tpu.memory_space<vmem>>, vector<8x32xf32>
    %cst = arith.constant dense<0.000000e+00> : vector<48x32xf32>
    %3 = tpu.matmul %1, %2, %cst {dimension_numbers = #tpu.dot_dimension_numbers<[1], [0], [0], [1], [0, 0, 1, 1], [], []>} : vector<48x8xf32>, vector<8x32xf32>, vector<48x32xf32> -> vector<48x32xf32>
    %c0_4 = arith.constant 0 : index
    %c0_5 = arith.constant 0 : index
    %4 = vector.load %arg4[%c0_4, %c0_5] : memref<32x2xf32, #tpu.memory_space<vmem>>, vector<32x2xf32>
    %cst_6 = arith.constant dense<0.000000e+00> : vector<48x2xf32>
    %5 = tpu.matmul %3, %4, %cst_6 {dimension_numbers = #tpu.dot_dimension_numbers<[1], [0], [0], [1], [0, 0, 1, 1], [], []>} : vector<48x32xf32>, vector<32x2xf32>, vector<48x2xf32> -> vector<48x2xf32>
    %6 = vector.shape_cast %5 : vector<48x2xf32> to vector<3x16x2xf32>
    %7 = vector.extract_strided_slice %6 {offsets = [0, 0, 0], sizes = [3, 16, 1], strides = [1, 1, 1]} : vector<3x16x2xf32> to vector<3x16x1xf32>
    %8 = vector.extract_strided_slice %6 {offsets = [0, 0, 1], sizes = [3, 16, 1], strides = [1, 1, 1]} : vector<3x16x2xf32> to vector<3x16x1xf32>
    %cst_7 = arith.constant dense<0.000000e+00> : vector<3x16x16xf32>
    %9 = tpu.matmul %7, %8, %cst_7 {dimension_numbers = #tpu.dot_dimension_numbers<[2], [2], [1], [1], [0, 0, 0, 1, 1, 1], [0], [0]>} : vector<3x16x1xf32>, vector<3x16x1xf32>, vector<3x16x16xf32> -> vector<3x16x16xf32>
    %cst_8 = arith.constant 0.000000e+00 : f32
    %10 = vector.broadcast %cst_8 : f32 to vector<3x16x16xf32>
    %11 = arith.cmpf ogt, %9, %10 : vector<3x16x16xf32>
    %cst_9 = arith.constant 0.00999999977 : f32
    %12 = vector.broadcast %cst_9 : f32 to vector<3x16x16xf32>
    %13 = arith.mulf %12, %9 : vector<3x16x16xf32>
    %14 = arith.select %11, %9, %13 : vector<3x16x16xi1>, vector<3x16x16xf32>
    %cst_10 = arith.constant dense<0xFF800000> : vector<3x16xf32>
    %15 = vector.multi_reduction <maximumf>, %14, %cst_10 [2] : vector<3x16x16xf32> to vector<3x16xf32>
    %16 = vector.shape_cast %15 : vector<3x16xf32> to vector<3x16x1xf32>
    %17 = vector.broadcast %16 : vector<3x16x1xf32> to vector<3x16x16xf32>
    %18 = arith.subf %14, %17 : vector<3x16x16xf32>
    %19 = math.exp %18 : vector<3x16x16xf32>
    %20 = vector.shape_cast %3 : vector<48x32xf32> to vector<3x16x32xf32>
    %cst_11 = arith.constant 0.000000e+00 : f32
    %21 = vector.broadcast %cst_11 : f32 to vector<48x32xf32>
    %c0_12 = arith.constant 0 : index
    %c0_13 = arith.constant 0 : index
    %c0_14 = arith.constant 0 : index
    %22 = vector.load %arg2[%c0_12, %c0_13, %c0_14] : memref<1x16x16xf32, #tpu.memory_space<vmem>>, vector<1x16x16xf32>
    %23 = vector.shape_cast %22 : vector<1x16x16xf32> to vector<16x16xf32>
    %24 = vector.shape_cast %23 : vector<16x16xf32> to vector<1x16x16xf32>
    %25 = vector.broadcast %24 : vector<1x16x16xf32> to vector<3x16x16xf32>
    %26 = arith.mulf %19, %25 : vector<3x16x16xf32>
    %cst_15 = arith.constant dense<0.000000e+00> : vector<3x16xf32>
    %27 = vector.multi_reduction <add>, %26, %cst_15 [2] : vector<3x16x16xf32> to vector<3x16xf32>
    %28 = vector.shape_cast %27 : vector<3x16xf32> to vector<3x16x1xf32>
    %29 = tpu.reciprocal %28 : vector<3x16x1xf32> -> vector<3x16x1xf32>
    %30 = vector.broadcast %29 : vector<3x16x1xf32> to vector<3x16x16xf32>
    %31 = arith.mulf %26, %30 : vector<3x16x16xf32>
    %cst_16 = arith.constant dense<0.000000e+00> : vector<3x16x32xf32>
    %32 = tpu.matmul %31, %20, %cst_16 {dimension_numbers = #tpu.dot_dimension_numbers<[2], [1], [1], [2], [0, 0, 0, 1, 1, 2], [0], [0]>} : vector<3x16x16xf32>, vector<3x16x32xf32>, vector<3x16x32xf32> -> vector<3x16x32xf32>
    %33 = vector.shape_cast %32 : vector<3x16x32xf32> to vector<48x32xf32>
    %c0_17 = arith.constant 0 : index
    %c0_18 = arith.constant 0 : index
    %c0_19 = arith.constant 0 : index
    %34 = vector.load %arg5[%c0_17, %c0_18, %c0_19] : memref<1x32x32xf32, #tpu.memory_space<vmem>>, vector<1x32x32xf32>
    %35 = vector.shape_cast %34 : vector<1x32x32xf32> to vector<32x32xf32>
    %cst_20 = arith.constant dense<0.000000e+00> : vector<48x32xf32>
    %36 = tpu.matmul %33, %35, %cst_20 {dimension_numbers = #tpu.dot_dimension_numbers<[1], [0], [0], [1], [0, 0, 1, 1], [], []>} : vector<48x32xf32>, vector<32x32xf32>, vector<48x32xf32> -> vector<48x32xf32>
    %37 = arith.addf %21, %36 : vector<48x32xf32>
    %38 = vector.shape_cast %37 : vector<48x32xf32> to vector<3x16x32xf32>
    %c0_21 = arith.constant 0 : index
    %c0_22 = arith.constant 0 : index
    %c0_23 = arith.constant 0 : index
    %39 = vector.load %arg6[%c0_21, %c0_22, %c0_23] : memref<3x16x32xf32, #tpu.memory_space<vmem>>, vector<3x16x32xf32>
    tpu.vector_store %arg6[%c0_21, %c0_22, %c0_23], %38 {strides = array<i32>} : memref<3x16x32xf32, #tpu.memory_space<vmem>>, vector<3x16x32xf32>,
    return
  }
  func.func @transform_0(%arg0: i32) -> (i32, i32, i32) {
    %c0_i32 = arith.constant 0 : i32
    %c0_i32_0 = arith.constant 0 : i32
    %c0_i32_1 = arith.constant 0 : i32
    return %arg0, %c0_i32, %c0_i32_0 : i32, i32, i32
  }
  func.func @transform_1(%arg0: i32) -> (i32, i32, i32) {
    %c0_i32 = arith.constant 0 : i32
    %c0_i32_0 = arith.constant 0 : i32
    %c0_i32_1 = arith.constant 0 : i32
    %c0_i32_2 = arith.constant 0 : i32
    return %c0_i32, %c0_i32_0, %c0_i32_1 : i32, i32, i32
  }
  func.func @transform_2(%arg0: i32) -> (i32, i32) {
    %c0_i32 = arith.constant 0 : i32
    %c0_i32_0 = arith.constant 0 : i32
    %c0_i32_1 = arith.constant 0 : i32
    return %c0_i32, %c0_i32_0 : i32, i32
  }
  func.func @transform_3(%arg0: i32) -> (i32, i32) {
    %c0_i32 = arith.constant 0 : i32
    %c0_i32_0 = arith.constant 0 : i32
    %c0_i32_1 = arith.constant 0 : i32
    return %c0_i32, %c0_i32_0 : i32, i32
  }
  func.func @transform_4(%arg0: i32) -> (i32, i32, i32) {
    %c0_i32 = arith.constant 0 : i32
    %c0_i32_0 = arith.constant 0 : i32
    %c0_i32_1 = arith.constant 0 : i32
    %c0_i32_2 = arith.constant 0 : i32
    return %c0_i32, %c0_i32_0, %c0_i32_1 : i32, i32, i32
  }
  func.func @transform_5(%arg0: i32) -> (i32, i32, i32) {
    %c0_i32 = arith.constant 0 : i32
    %c0_i32_0 = arith.constant 0 : i32
    %c0_i32_1 = arith.constant 0 : i32
    return %arg0, %c0_i32, %c0_i32_0 : i32, i32, i32
  }
}

</mosaic_0001>

<llo_original>
// kernel: tpu_custom_call.1
$region0: #{tpu_custom_call.1}
  #allocation0 [shape = 'u32[]', space=smem, size = 0x4, offset = 0x4, fixed_abs, tag = 'smem constant byte address 0x4 - core index']
  #allocation1 [shape = 'u32[144,128]{1,0:T(1,128)}', space=vmem, size = 0x12000, scoped, tag = 'internal scratch']
  %s0 = inlined_call_operand.vmem [shape: f32[3,16,8], index: 0, kind: input, shape index: {}]
  %s1 = inlined_call_operand.vmem [shape: f32[1,16,16], index: 1, kind: input, shape index: {}]
  %s2 = inlined_call_operand.vmem [shape: f32[8,32], index: 2, kind: input, shape index: {}]
  %s3 = inlined_call_operand.vmem [shape: f32[32,2], index: 3, kind: input, shape index: {}]
  %s4 = inlined_call_operand.vmem [shape: f32[1,32,32], index: 4, kind: input, shape index: {}]
  %s5 = inlined_call_operand.hbm [shape: f32[3,16,32], index: 5, kind: output, shape index: {}]
  %s6 = sld [smem:[#allocation0]]
  $region30: #{tpu_custom_call.1} parent=0
    _
  %s8 = ssub.s32 1, %s6
  %s9 = scalar_select 0, %s8, %s6
  $region1: #{tpu_custom_call.1} parent=0
    #allocation2 [shape = 'u8[24576]{0}', space=vmem, size = 0x6000, scoped, tag = 'output window, operand 0, single buffered']
    #allocation3 [shape = 's32[1]{0}', space=sflag, size = 0x4, scoped, tag = 'scoped memory for tpu_custom_call.1']
    %10 = vsyncpa [#allocation3], 0
    // Predicated region
    $region2: #{tpu_custom_call.1} parent=1 // pred_check
      _
    $region3: #{tpu_custom_call.1} parent=1 // pred_check_branch
      %12 = sbr.rel (0) target = $region5
    $region4: #{tpu_custom_call.1} parent=1 // pred_region
      _
    $region5: #{tpu_custom_call.1} parent=1 // pred_fallthru
      _
    // Predicated region
    $region6: #{tpu_custom_call.1} parent=1 // pred_check
      _
    $region7: #{tpu_custom_call.1} parent=1 // pred_check_branch
      %14 = sbr.rel (0) target = $region9
    $region8: #{tpu_custom_call.1} parent=1 // pred_region
      _
    $region9: #{tpu_custom_call.1} parent=1 // pred_fallthru
      _
    // Predicated region
    $region10: #{tpu_custom_call.1} parent=1 // pred_check
      _
    $region11: #{tpu_custom_call.1} parent=1 // pred_check_branch
      %16 = sbr.rel (0) target = $region13
    $region12: #{tpu_custom_call.1} parent=1 // pred_region
      _
    $region13: #{tpu_custom_call.1} parent=1 // pred_fallthru
      _
    // Predicated region
    $region14: #{tpu_custom_call.1} parent=1 // pred_check
      _
    $region15: #{tpu_custom_call.1} parent=1 // pred_check_branch
      %18 = sbr.rel (0) target = $region17
    $region16: #{tpu_custom_call.1} parent=1 // pred_region
      _
    $region17: #{tpu_custom_call.1} parent=1 // pred_fallthru
      _
    // Predicated region
    $region18: #{tpu_custom_call.1} parent=1 // pred_check
      _
    $region19: #{tpu_custom_call.1} parent=1 // pred_check_branch
      %20 = sbr.rel (0) target = $region21
    $region20: #{tpu_custom_call.1} parent=1 // pred_region
      _
    $region21: #{tpu_custom_call.1} parent=1 // pred_fallthru
      _
    %v21 = vld [vmem:[%s0] sm:$0xff]
    %v22 = vld [vmem:[%s0 + $0x8] sm:$0xff]
    %v23 = vld [vmem:[%s0 + $0x10] sm:$0xff]
    %v24 = vld [vmem:[%s0 + $0x18] sm:$0xff]
    %v25 = vld [vmem:[%s0 + $0x20] sm:$0xff]
    %v26 = vld [vmem:[%s0 + $0x28] sm:$0xff]
    %v27 = vld [vmem:[%s2] sm:$0xff]
    %vm28 = vcmask 64512
    %v30 = vsel %vm28, %v21, 0
    %v33 = vsel %vm28, %v22, 0
    %v36 = vsel %vm28, %v23, 0
    %v39 = vsel %vm28, %v24, 0
    %v42 = vsel %vm28, %v25, 0
    %v45 = vsel %vm28, %v26, 0
    %47 = vmatprep.subr.mxu0 0.0
    %48 = vmatpush1.msra.mxu0 %v27
    %49 = vmatprep.subr.mxu0 0.0
    %50 = vmatpush1.msra.mxu0 0.0
    %51 = vmatprep.subr.mxu0 0.0
    %52 = vmatpush1.msra.mxu0 0.0
    %53 = vmatprep.subr.mxu0 0.0
    %54 = vmatpush1.msra.mxu0 0.0
    %55 = vmatprep.subr.mxu0 0.0
    %56 = vmatpush1.msra.mxu0 0.0
    %57 = vmatprep.subr.mxu0 0.0
    %58 = vmatpush1.msra.mxu0 0.0
    %59 = vmatprep.subr.mxu0 0.0
    %60 = vmatpush1.msra.mxu0 0.0
    %61 = vmatprep.subr.mxu0 0.0
    %62 = vmatpush1.msra.mxu0 0.0
    %63 = vmatprep.subr.mxu0 0.0
    %64 = vmatpush1.msra.mxu0 0.0
    %65 = vmatprep.subr.mxu0 0.0
    %66 = vmatpush1.msra.mxu0 0.0
    %67 = vmatprep.subr.mxu0 0.0
    %68 = vmatpush1.msra.mxu0 0.0
    %69 = vmatprep.subr.mxu0 0.0
    %70 = vmatpush1.msra.mxu0 0.0
    %71 = vmatprep.subr.mxu0 0.0
    %72 = vmatpush1.msra.mxu0 0.0
    %73 = vmatprep.subr.mxu0 0.0
    %74 = vmatpush1.msra.mxu0 0.0
    %75 = vmatprep.subr.mxu0 0.0
    %76 = vmatpush1.msra.mxu0 0.0
    %77 = vmatprep.subr.mxu0 0.0
    %78 = vmatpush1.msra.mxu0 0.0
    %79 = vmatprep.subr.mxu0 0.0
    %80 = vmatpush1.msra.mxu0 0.0
    %81 = vmatprep.subr.mxu0 0.0
    %82 = vmatpush1.msra.mxu0 0.0
    %83 = vmatprep.subr.mxu0 0.0
    %84 = vmatpush1.msra.mxu0 0.0
    %85 = vmatprep.subr.mxu0 0.0
    %86 = vmatpush1.msra.mxu0 0.0
    %87 = vmatprep.subr.mxu0 0.0
    %88 = vmatpush1.msra.mxu0 0.0
    %89 = vmatprep.subr.mxu0 0.0
    %90 = vmatpush1.msra.mxu0 0.0
    %91 = vmatprep.subr.mxu0 0.0
    %92 = vmatpush1.msra.mxu0 0.0
    %93 = vmatprep.subr.mxu0 0.0
    %94 = vmatpush1.msra.mxu0 0.0
    %95 = vmatprep.subr.mxu0 0.0
    %96 = vmatpush1.msra.mxu0 0.0
    %97 = vmatprep.subr.mxu0 0.0
    %98 = vmatpush1.msra.mxu0 0.0
    %99 = vmatprep.subr.mxu0 0.0
    %100 = vmatpush1.msra.mxu0 0.0
    %101 = vmatprep.subr.mxu0 0.0
    %102 = vmatpush1.msra.mxu0 0.0
    %103 = vmatprep.subr.mxu0 0.0
    %104 = vmatpush1.msra.mxu0 0.0
    %105 = vmatprep.subr.mxu0 0.0
    %106 = vmatpush1.msra.mxu0 0.0
    %107 = vmatprep.subr.mxu0 0.0
    %108 = vmatpush1.msra.mxu0 0.0
    %109 = vmatprep.subr.mxu0 0.0
    %110 = vmatpush1.msra.mxu0 0.0
    %111 = vmatprep.mubr.f32.mxu0 0.0
    %112 = vmatmul.mubr.f32.gmra.mrb[0].mxu0 %v30
    %v113 = vpop.f32.mrb[0].mxu0
    %v114 = vadd.f32 0.0, %v113
    %v115 = vpop.f32.mrb[0].mxu0
    %116 = vmatprep.mubr.f32.mxu0 0.0
    %117 = vmatmul.mubr.f32.gmra.mrb[0].mxu0 %v33
    %v118 = vpop.f32.mrb[0].mxu0
    %v119 = vadd.f32 0.0, %v118
    %v120 = vpop.f32.mrb[0].mxu0
    %121 = vmatprep.mubr.f32.mxu0 0.0
    %122 = vmatmul.mubr.f32.gmra.mrb[0].mxu0 %v36
    %v123 = vpop.f32.mrb[0].mxu0
    %v124 = vadd.f32 0.0, %v123
    %v125 = vpop.f32.mrb[0].mxu0
    %126 = vmatprep.mubr.f32.mxu0 0.0
    %127 = vmatmul.mubr.f32.gmra.mrb[0].mxu0 %v39
    %v128 = vpop.f32.mrb[0].mxu0
    %v129 = vadd.f32 0.0, %v128
    %v130 = vpop.f32.mrb[0].mxu0
    %131 = vmatprep.mubr.f32.mxu0 0.0
    %132 = vmatmul.mubr.f32.gmra.mrb[0].mxu0 %v42
    %v133 = vpop.f32.mrb[0].mxu0
    %v134 = vadd.f32 0.0, %v133
    %v135 = vpop.f32.mrb[0].mxu0
    %136 = vmatprep.mubr.f32.mxu0 0.0
    %137 = vmatmul.mubr.f32.gmra.mrb[0].mxu0 %v45
    %v138 = vpop.f32.mrb[0].mxu0
    %v139 = vadd.f32 0.0, %v138
    %v140 = vpop.f32.mrb[0].mxu0
    %141 = vdwg.mxu0
    %v142 = vld [vmem:[%s3] sm:$0xff]
    %v143 = vld [vmem:[%s3 + $0x8] sm:$0xff]
    %v144 = vld [vmem:[%s3 + $0x10] sm:$0xff]
    %v145 = vld [vmem:[%s3 + $0x18] sm:$0xff]
    %vm146 = vcmask 261120
    %v148 = vsel %vm146, %v114, 0
    %v151 = vsel %vm146, %v119, 0
    %v154 = vsel %vm146, %v124, 0
    %v157 = vsel %vm146, %v129, 0
    %v160 = vsel %vm146, %v134, 0
    %v163 = vsel %vm146, %v139, 0
    %165 = vmatprep.subr.mxu0 0.0
    %166 = vmatpush1.msra.mxu0 %v142
    %167 = vmatprep.subr.mxu0 0.0
    %168 = vmatpush1.msra.mxu0 %v143
    %169 = vmatprep.subr.mxu0 0.0
    %170 = vmatpush1.msra.mxu0 %v144
    %171 = vmatprep.subr.mxu0 0.0
    %172 = vmatpush1.msra.mxu0 %v145
    %173 = vmatprep.subr.mxu0 0.0
    %174 = vmatpush1.msra.mxu0 0.0
    %175 = vmatprep.subr.mxu0 0.0
    %176 = vmatpush1.msra.mxu0 0.0
    %177 = vmatprep.subr.mxu0 0.0
    %178 = vmatpush1.msra.mxu0 0.0
    %179 = vmatprep.subr.mxu0 0.0
    %180 = vmatpush1.msra.mxu0 0.0
    %181 = vmatprep.subr.mxu0 0.0
    %182 = vmatpush1.msra.mxu0 0.0
    %183 = vmatprep.subr.mxu0 0.0
    %184 = vmatpush1.msra.mxu0 0.0
    %185 = vmatprep.subr.mxu0 0.0
    %186 = vmatpush1.msra.mxu0 0.0
    %187 = vmatprep.subr.mxu0 0.0
    %188 = vmatpush1.msra.mxu0 0.0
    %189 = vmatprep.subr.mxu0 0.0
    %190 = vmatpush1.msra.mxu0 0.0
    %191 = vmatprep.subr.mxu0 0.0
    %192 = vmatpush1.msra.mxu0 0.0
    %193 = vmatprep.subr.mxu0 0.0
    %194 = vmatpush1.msra.mxu0 0.0
    %195 = vmatprep.subr.mxu0 0.0
    %196 = vmatpush1.msra.mxu0 0.0
    %197 = vmatprep.subr.mxu0 0.0
    %198 = vmatpush1.msra.mxu0 0.0
    %199 = vmatprep.subr.mxu0 0.0
    %200 = vmatpush1.msra.mxu0 0.0
    %201 = vmatprep.subr.mxu0 0.0
    %202 = vmatpush1.msra.mxu0 0.0
    %203 = vmatprep.subr.mxu0 0.0
    %204 = vmatpush1.msra.mxu0 0.0
    %205 = vmatprep.subr.mxu0 0.0
    %206 = vmatpush1.msra.mxu0 0.0
    %207 = vmatprep.subr.mxu0 0.0
    %208 = vmatpush1.msra.mxu0 0.0
    %209 = vmatprep.subr.mxu0 0.0
    %210 = vmatpush1.msra.mxu0 0.0
    %211 = vmatprep.subr.mxu0 0.0
    %212 = vmatpush1.msra.mxu0 0.0
    %213 = vmatprep.subr.mxu0 0.0
    %214 = vmatpush1.msra.mxu0 0.0
    %215 = vmatprep.subr.mxu0 0.0
    %216 = vmatpush1.msra.mxu0 0.0
    %217 = vmatprep.subr.mxu0 0.0
    %218 = vmatpush1.msra.mxu0 0.0
    %219 = vmatprep.subr.mxu0 0.0
    %220 = vmatpush1.msra.mxu0 0.0
    %221 = vmatprep.subr.mxu0 0.0
    %222 = vmatpush1.msra.mxu0 0.0
    %223 = vmatprep.subr.mxu0 0.0
    %224 = vmatpush1.msra.mxu0 0.0
    %225 = vmatprep.subr.mxu0 0.0
    %226 = vmatpush1.msra.mxu0 0.0
    %227 = vmatprep.subr.mxu0 0.0
    %228 = vmatpush1.msra.mxu0 0.0
    %229 = vmatprep.mubr.f32.mxu0 0.0
    %230 = vmatmul.mubr.f32.gmra.mrb[0].mxu0 %v148
    %v231 = vpop.f32.mrb[0].mxu0
    %v232 = vadd.f32 0.0, %v231
    %v233 = vpop.f32.mrb[0].mxu0
    %234 = vmatprep.mubr.f32.mxu0 0.0
    %235 = vmatmul.mubr.f32.gmra.mrb[0].mxu0 %v151
    %v236 = vpop.f32.mrb[0].mxu0
    %v237 = vadd.f32 0.0, %v236
    %v238 = vpop.f32.mrb[0].mxu0
    %239 = vmatprep.mubr.f32.mxu0 0.0
    %240 = vmatmul.mubr.f32.gmra.mrb[0].mxu0 %v154
    %v241 = vpop.f32.mrb[0].mxu0
    %v242 = vadd.f32 0.0, %v241
    %v243 = vpop.f32.mrb[0].mxu0
    %244 = vmatprep.mubr.f32.mxu0 0.0
    %245 = vmatmul.mubr.f32.gmra.mrb[0].mxu0 %v157
    %v246 = vpop.f32.mrb[0].mxu0
    %v247 = vadd.f32 0.0, %v246
    %v248 = vpop.f32.mrb[0].mxu0
    %249 = vmatprep.mubr.f32.mxu0 0.0
    %250 = vmatmul.mubr.f32.gmra.mrb[0].mxu0 %v160
    %v251 = vpop.f32.mrb[0].mxu0
    %v252 = vadd.f32 0.0, %v251
    %v253 = vpop.f32.mrb[0].mxu0
    %254 = vmatprep.mubr.f32.mxu0 0.0
    %255 = vmatmul.mubr.f32.gmra.mrb[0].mxu0 %v163
    %v256 = vpop.f32.mrb[0].mxu0
    %v257 = vadd.f32 0.0, %v256
    %v258 = vpop.f32.mrb[0].mxu0
    %259 = vdwg.mxu0
    %262 = vrot.lane.b32.xlu0 %v232, 127
    %v263 = vpop.permute.xlu0 %262
    %264 = vrot.lane.b32.xlu0 %v237, 127
    %v265 = vpop.permute.xlu0 %264
    %vm266 = vcmask 7168
    %v267 = vsel %vm266, %v232, 0
    %v269 = vsel %vm266, %v237, 0
    %v271 = vsel %vm266, %v263, 0
    %v273 = vsel %vm266, %v265, 0
    %275 = vmatprep.subr.mxu0 0.0
    %276 = vmatpush1.xpose.msra.mxu0 %v271
    %277 = vmatprep.subr.mxu0 0.0
    %278 = vmatpush1.xpose.msra.mxu0 %v273
    %279 = vmatprep.subr.mxu0 0.0
    %280 = vmatpush1.xpose.msra.mxu0 0.0
    %281 = vmatprep.subr.mxu0 0.0
    %282 = vmatpush1.xpose.msra.mxu0 0.0
    %283 = vmatprep.subr.mxu0 0.0
    %284 = vmatpush1.xpose.msra.mxu0 0.0
    %285 = vmatprep.subr.mxu0 0.0
    %286 = vmatpush1.xpose.msra.mxu0 0.0
    %287 = vmatprep.subr.mxu0 0.0
    %288 = vmatpush1.xpose.msra.mxu0 0.0
    %289 = vmatprep.subr.mxu0 0.0
    %290 = vmatpush1.xpose.msra.mxu0 0.0
    %291 = vmatprep.subr.mxu0 0.0
    %292 = vmatpush1.xpose.msra.mxu0 0.0
    %293 = vmatprep.subr.mxu0 0.0
    %294 = vmatpush1.xpose.msra.mxu0 0.0
    %295 = vmatprep.subr.mxu0 0.0
    %296 = vmatpush1.xpose.msra.mxu0 0.0
    %297 = vmatprep.subr.mxu0 0.0
    %298 = vmatpush1.xpose.msra.mxu0 0.0
    %299 = vmatprep.subr.mxu0 0.0
    %300 = vmatpush1.xpose.msra.mxu0 0.0
    %301 = vmatprep.subr.mxu0 0.0
    %302 = vmatpush1.xpose.msra.mxu0 0.0
    %303 = vmatprep.subr.mxu0 0.0
    %304 = vmatpush1.xpose.msra.mxu0 0.0
    %305 = vmatprep.subr.mxu0 0.0
    %306 = vmatpush1.xpose.msra.mxu0 0.0
    %307 = vmatprep.subr.mxu0 0.0
    %308 = vmatpush1.xpose.msra.mxu0 0.0
    %309 = vmatprep.subr.mxu0 0.0
    %310 = vmatpush1.xpose.msra.mxu0 0.0
    %311 = vmatprep.subr.mxu0 0.0
    %312 = vmatpush1.xpose.msra.mxu0 0.0
    %313 = vmatprep.subr.mxu0 0.0
    %314 = vmatpush1.xpose.msra.mxu0 0.0
    %315 = vmatprep.subr.mxu0 0.0
    %316 = vmatpush1.xpose.msra.mxu0 0.0
    %317 = vmatprep.subr.mxu0 0.0
    %318 = vmatpush1.xpose.msra.mxu0 0.0
    %319 = vmatprep.subr.mxu0 0.0
    %320 = vmatpush1.xpose.msra.mxu0 0.0
    %321 = vmatprep.subr.mxu0 0.0
    %322 = vmatpush1.xpose.msra.mxu0 0.0
    %323 = vmatprep.subr.mxu0 0.0
    %324 = vmatpush1.xpose.msra.mxu0 0.0
    %325 = vmatprep.subr.mxu0 0.0
    %326 = vmatpush1.xpose.msra.mxu0 0.0
    %327 = vmatprep.subr.mxu0 0.0
    %328 = vmatpush1.xpose.msra.mxu0 0.0
    %329 = vmatprep.subr.mxu0 0.0
    %330 = vmatpush1.xpose.msra.mxu0 0.0
    %331 = vmatprep.subr.mxu0 0.0
    %332 = vmatpush1.xpose.msra.mxu0 0.0
    %333 = vmatprep.subr.mxu0 0.0
    %334 = vmatpush1.xpose.msra.mxu0 0.0
    %335 = vmatprep.subr.mxu0 0.0
    %336 = vmatpush1.xpose.msra.mxu0 0.0
    %337 = vmatprep.subr.mxu0 0.0
    %338 = vmatpush1.xpose.msra.mxu0 0.0
    %339 = vmatprep.mubr.f32.mxu0 0.0
    %340 = vmatmul.mubr.f32.gmra.mrb[0].mxu0 %v267
    %v341 = vpop.f32.mrb[0].mxu0
    %v342 = vadd.f32 0.0, %v341
    %v343 = vpop.f32.mrb[0].mxu0
    %344 = vmatprep.mubr.f32.mxu0 0.0
    %345 = vmatmul.mubr.f32.gmra.mrb[0].mxu0 %v269
    %v346 = vpop.f32.mrb[0].mxu0
    %v347 = vadd.f32 0.0, %v346
    %v348 = vpop.f32.mrb[0].mxu0
    %349 = vdwg.mxu0
    %352 = vrot.lane.b32.xlu0 %v242, 127
    %v353 = vpop.permute.xlu0 %352
    %354 = vrot.lane.b32.xlu0 %v247, 127
    %v355 = vpop.permute.xlu0 %354
    %v356 = vsel %vm266, %v242, 0
    %v358 = vsel %vm266, %v247, 0
    %v360 = vsel %vm266, %v353, 0
    %v362 = vsel %vm266, %v355, 0
    %364 = vmatprep.subr.mxu0 0.0
    %365 = vmatpush1.xpose.msra.mxu0 %v360
    %366 = vmatprep.subr.mxu0 0.0
    %367 = vmatpush1.xpose.msra.mxu0 %v362
    %368 = vmatprep.subr.mxu0 0.0
    %369 = vmatpush1.xpose.msra.mxu0 0.0
    %370 = vmatprep.subr.mxu0 0.0
    %371 = vmatpush1.xpose.msra.mxu0 0.0
    %372 = vmatprep.subr.mxu0 0.0
    %373 = vmatpush1.xpose.msra.mxu0 0.0
    %374 = vmatprep.subr.mxu0 0.0
    %375 = vmatpush1.xpose.msra.mxu0 0.0
    %376 = vmatprep.subr.mxu0 0.0
    %377 = vmatpush1.xpose.msra.mxu0 0.0
    %378 = vmatprep.subr.mxu0 0.0
    %379 = vmatpush1.xpose.msra.mxu0 0.0
    %380 = vmatprep.subr.mxu0 0.0
    %381 = vmatpush1.xpose.msra.mxu0 0.0
    %382 = vmatprep.subr.mxu0 0.0
    %383 = vmatpush1.xpose.msra.mxu0 0.0
    %384 = vmatprep.subr.mxu0 0.0
    %385 = vmatpush1.xpose.msra.mxu0 0.0
    %386 = vmatprep.subr.mxu0 0.0
    %387 = vmatpush1.xpose.msra.mxu0 0.0
    %388 = vmatprep.subr.mxu0 0.0
    %389 = vmatpush1.xpose.msra.mxu0 0.0
    %390 = vmatprep.subr.mxu0 0.0
    %391 = vmatpush1.xpose.msra.mxu0 0.0
    %392 = vmatprep.subr.mxu0 0.0
    %393 = vmatpush1.xpose.msra.mxu0 0.0
    %394 = vmatprep.subr.mxu0 0.0
    %395 = vmatpush1.xpose.msra.mxu0 0.0
    %396 = vmatprep.subr.mxu0 0.0
    %397 = vmatpush1.xpose.msra.mxu0 0.0
    %398 = vmatprep.subr.mxu0 0.0
    %399 = vmatpush1.xpose.msra.mxu0 0.0
    %400 = vmatprep.subr.mxu0 0.0
    %401 = vmatpush1.xpose.msra.mxu0 0.0
    %402 = vmatprep.subr.mxu0 0.0
    %403 = vmatpush1.xpose.msra.mxu0 0.0
    %404 = vmatprep.subr.mxu0 0.0
    %405 = vmatpush1.xpose.msra.mxu0 0.0
    %406 = vmatprep.subr.mxu0 0.0
    %407 = vmatpush1.xpose.msra.mxu0 0.0
    %408 = vmatprep.subr.mxu0 0.0
    %409 = vmatpush1.xpose.msra.mxu0 0.0
    %410 = vmatprep.subr.mxu0 0.0
    %411 = vmatpush1.xpose.msra.mxu0 0.0
    %412 = vmatprep.subr.mxu0 0.0
    %413 = vmatpush1.xpose.msra.mxu0 0.0
    %414 = vmatprep.subr.mxu0 0.0
    %415 = vmatpush1.xpose.msra.mxu0 0.0
    %416 = vmatprep.subr.mxu0 0.0
    %417 = vmatpush1.xpose.msra.mxu0 0.0
    %418 = vmatprep.subr.mxu0 0.0
    %419 = vmatpush1.xpose.msra.mxu0 0.0
    %420 = vmatprep.subr.mxu0 0.0
    %421 = vmatpush1.xpose.msra.mxu0 0.0
    %422 = vmatprep.subr.mxu0 0.0
    %423 = vmatpush1.xpose.msra.mxu0 0.0
    %424 = vmatprep.subr.mxu0 0.0
    %425 = vmatpush1.xpose.msra.mxu0 0.0
    %426 = vmatprep.subr.mxu0 0.0
    %427 = vmatpush1.xpose.msra.mxu0 0.0
    %428 = vmatprep.mubr.f32.mxu0 0.0
    %429 = vmatmul.mubr.f32.gmra.mrb[0].mxu0 %v356
    %v430 = vpop.f32.mrb[0].mxu0
    %v431 = vadd.f32 0.0, %v430
    %v432 = vpop.f32.mrb[0].mxu0
    %433 = vmatprep.mubr.f32.mxu0 0.0
    %434 = vmatmul.mubr.f32.gmra.mrb[0].mxu0 %v358
    %v435 = vpop.f32.mrb[0].mxu0
    %v436 = vadd.f32 0.0, %v435
    %v437 = vpop.f32.mrb[0].mxu0
    %438 = vdwg.mxu0
    %441 = vrot.lane.b32.xlu0 %v252, 127
    %v442 = vpop.permute.xlu0 %441
    %443 = vrot.lane.b32.xlu0 %v257, 127
    %v444 = vpop.permute.xlu0 %443
    %v445 = vsel %vm266, %v252, 0
    %v447 = vsel %vm266, %v257, 0
    %v449 = vsel %vm266, %v442, 0
    %v451 = vsel %vm266, %v444, 0
    %453 = vmatprep.subr.mxu0 0.0
    %454 = vmatpush1.xpose.msra.mxu0 %v449
    %455 = vmatprep.subr.mxu0 0.0
    %456 = vmatpush1.xpose.msra.mxu0 %v451
    %457 = vmatprep.subr.mxu0 0.0
    %458 = vmatpush1.xpose.msra.mxu0 0.0
    %459 = vmatprep.subr.mxu0 0.0
    %460 = vmatpush1.xpose.msra.mxu0 0.0
    %461 = vmatprep.subr.mxu0 0.0
    %462 = vmatpush1.xpose.msra.mxu0 0.0
    %463 = vmatprep.subr.mxu0 0.0
    %464 = vmatpush1.xpose.msra.mxu0 0.0
    %465 = vmatprep.subr.mxu0 0.0
    %466 = vmatpush1.xpose.msra.mxu0 0.0
    %467 = vmatprep.subr.mxu0 0.0
    %468 = vmatpush1.xpose.msra.mxu0 0.0
    %469 = vmatprep.subr.mxu0 0.0
    %470 = vmatpush1.xpose.msra.mxu0 0.0
    %471 = vmatprep.subr.mxu0 0.0
    %472 = vmatpush1.xpose.msra.mxu0 0.0
    %473 = vmatprep.subr.mxu0 0.0
    %474 = vmatpush1.xpose.msra.mxu0 0.0
    %475 = vmatprep.subr.mxu0 0.0
    %476 = vmatpush1.xpose.msra.mxu0 0.0
    %477 = vmatprep.subr.mxu0 0.0
    %478 = vmatpush1.xpose.msra.mxu0 0.0
    %479 = vmatprep.subr.mxu0 0.0
    %480 = vmatpush1.xpose.msra.mxu0 0.0
    %481 = vmatprep.subr.mxu0 0.0
    %482 = vmatpush1.xpose.msra.mxu0 0.0
    %483 = vmatprep.subr.mxu0 0.0
    %484 = vmatpush1.xpose.msra.mxu0 0.0
    %485 = vmatprep.subr.mxu0 0.0
    %486 = vmatpush1.xpose.msra.mxu0 0.0
    %487 = vmatprep.subr.mxu0 0.0
    %488 = vmatpush1.xpose.msra.mxu0 0.0
    %489 = vmatprep.subr.mxu0 0.0
    %490 = vmatpush1.xpose.msra.mxu0 0.0
    %491 = vmatprep.subr.mxu0 0.0
    %492 = vmatpush1.xpose.msra.mxu0 0.0
    %493 = vmatprep.subr.mxu0 0.0
    %494 = vmatpush1.xpose.msra.mxu0 0.0
    %495 = vmatprep.subr.mxu0 0.0
    %496 = vmatpush1.xpose.msra.mxu0 0.0
    %497 = vmatprep.subr.mxu0 0.0
    %498 = vmatpush1.xpose.msra.mxu0 0.0
    %499 = vmatprep.subr.mxu0 0.0
    %500 = vmatpush1.xpose.msra.mxu0 0.0
    %501 = vmatprep.subr.mxu0 0.0
    %502 = vmatpush1.xpose.msra.mxu0 0.0
    %503 = vmatprep.subr.mxu0 0.0
    %504 = vmatpush1.xpose.msra.mxu0 0.0
    %505 = vmatprep.subr.mxu0 0.0
    %506 = vmatpush1.xpose.msra.mxu0 0.0
    %507 = vmatprep.subr.mxu0 0.0
    %508 = vmatpush1.xpose.msra.mxu0 0.0
    %509 = vmatprep.subr.mxu0 0.0
    %510 = vmatpush1.xpose.msra.mxu0 0.0
    %511 = vmatprep.subr.mxu0 0.0
    %512 = vmatpush1.xpose.msra.mxu0 0.0
    %513 = vmatprep.subr.mxu0 0.0
    %514 = vmatpush1.xpose.msra.mxu0 0.0
    %515 = vmatprep.subr.mxu0 0.0
    %516 = vmatpush1.xpose.msra.mxu0 0.0
    %517 = vmatprep.mubr.f32.mxu0 0.0
    %518 = vmatmul.mubr.f32.gmra.mrb[0].mxu0 %v445
    %v519 = vpop.f32.mrb[0].mxu0
    %v520 = vadd.f32 0.0, %v519
    %v521 = vpop.f32.mrb[0].mxu0
    %522 = vmatprep.mubr.f32.mxu0 0.0
    %523 = vmatmul.mubr.f32.gmra.mrb[0].mxu0 %v447
    %v524 = vpop.f32.mrb[0].mxu0
    %v525 = vadd.f32 0.0, %v524
    %v526 = vpop.f32.mrb[0].mxu0
    %527 = vdwg.mxu0
    %vm528 = vcmp.gt.f32.partialorder %v342, 0.0
    %vm529 = vcmp.gt.f32.partialorder %v347, 0.0
    %vm530 = vcmp.gt.f32.partialorder %v431, 0.0
    %vm531 = vcmp.gt.f32.partialorder %v436, 0.0
    %vm532 = vcmp.gt.f32.partialorder %v520, 0.0
    %vm533 = vcmp.gt.f32.partialorder %v525, 0.0
    %v534 = vmul.f32 %v342, 0.01
    %v535 = vmul.f32 %v347, 0.01
    %v536 = vmul.f32 %v431, 0.01
    %v537 = vmul.f32 %v436, 0.01
    %v538 = vmul.f32 %v520, 0.01
    %v539 = vmul.f32 %v525, 0.01
    %v540 = vsel %vm528, %v342, %v534
    %v541 = vsel %vm529, %v347, %v535
    %v542 = vsel %vm530, %v431, %v536
    %v543 = vsel %vm531, %v436, %v537
    %v544 = vsel %vm532, %v520, %v538
    %v545 = vsel %vm533, %v525, %v539
    %vm546 = vcmask 130048
    %v547 = vsel %vm546, %v540, -inf
    %548 = vmax.xlane.f32.xlu0 %v547
    %v549 = vpop.xlane.xlu0 %548
    %v550 = vsel %vm546, %v541, -inf
    %551 = vmax.xlane.f32.xlu0 %v550
    %v552 = vpop.xlane.xlu0 %551
    %v553 = vsel %vm546, %v542, -inf
    %554 = vmax.xlane.f32.xlu0 %v553
    %v555 = vpop.xlane.xlu0 %554
    %v556 = vsel %vm546, %v543, -inf
    %557 = vmax.xlane.f32.xlu0 %v556
    %v558 = vpop.xlane.xlu0 %557
    %v559 = vsel %vm546, %v544, -inf
    %560 = vmax.xlane.f32.xlu0 %v559
    %v561 = vpop.xlane.xlu0 %560
    %v562 = vsel %vm546, %v545, -inf
    %563 = vmax.xlane.f32.xlu0 %v562
    %v564 = vpop.xlane.xlu0 %563
    %v565 = vsub.f32 %v540, %v549
    %v566 = vsub.f32 %v541, %v552
    %v567 = vsub.f32 %v542, %v555
    %v568 = vsub.f32 %v543, %v558
    %v569 = vsub.f32 %v544, %v561
    %v570 = vsub.f32 %v545, %v564
    %v571 = vmul.f32 %v565, 1.442695
    %v572 = vpow.pop %v571
    %v573 = vmul.f32 %v566, 1.442695
    %v574 = vpow.pop %v573
    %v575 = vmul.f32 %v567, 1.442695
    %v576 = vpow.pop %v575
    %v577 = vmul.f32 %v568, 1.442695
    %v578 = vpow.pop %v577
    %v579 = vmul.f32 %v569, 1.442695
    %v580 = vpow.pop %v579
    %v581 = vmul.f32 %v570, 1.442695
    %v582 = vpow.pop %v581
    %v583 = vld [vmem:[%s1] sm:$0xff]
    %v584 = vld [vmem:[%s1 + $0x8] sm:$0xff]
    %v585 = vmul.f32 %v572, %v583
    %v586 = vmul.f32 %v574, %v584
    %v587 = vmul.f32 %v576, %v583
    %v588 = vmul.f32 %v578, %v584
    %v589 = vmul.f32 %v580, %v583
    %v590 = vmul.f32 %v582, %v584
    %v591 = vsel %vm546, %v585, 0.0
    %592 = vadd.xlane.f32.xlu0 %v591
    %v593 = vpop.xlane.xlu0 %592
    %v594 = vsel %vm546, %v586, 0.0
    %595 = vadd.xlane.f32.xlu0 %v594
    %v596 = vpop.xlane.xlu0 %595
    %v597 = vsel %vm546, %v587, 0.0
    %598 = vadd.xlane.f32.xlu0 %v597
    %v599 = vpop.xlane.xlu0 %598
    %v600 = vsel %vm546, %v588, 0.0
    %601 = vadd.xlane.f32.xlu0 %v600
    %v602 = vpop.xlane.xlu0 %601
    %v603 = vsel %vm546, %v589, 0.0
    %604 = vadd.xlane.f32.xlu0 %v603
    %v605 = vpop.xlane.xlu0 %604
    %v606 = vsel %vm546, %v590, 0.0
    %607 = vadd.xlane.f32.xlu0 %v606
    %v608 = vpop.xlane.xlu0 %607
    %v609 = vrcp.pop %v593
    %v610 = vrcp.pop %v596
    %v611 = vrcp.pop %v599
    %v612 = vrcp.pop %v602
    %v613 = vrcp.pop %v605
    %v614 = vrcp.pop %v608
    %v615 = vmul.f32 %v585, %v609
    %v616 = vmul.f32 %v586, %v610
    %v617 = vmul.f32 %v587, %v611
    %v618 = vmul.f32 %v588, %v612
    %v619 = vmul.f32 %v589, %v613
    %v620 = vmul.f32 %v590, %v614
    %v622 = vsel %vm546, %v615, 0
    %v625 = vsel %vm546, %v616, 0
    %627 = vmatprep.subr.mxu0 0.0
    %628 = vmatpush1.msra.mxu0 %v114
    %629 = vmatprep.subr.mxu0 0.0
    %630 = vmatpush1.msra.mxu0 %v119
    %631 = vmatprep.subr.mxu0 0.0
    %632 = vmatpush1.msra.mxu0 0.0
    %633 = vmatprep.subr.mxu0 0.0
    %634 = vmatpush1.msra.mxu0 0.0
    %635 = vmatprep.subr.mxu0 0.0
    %636 = vmatpush1.msra.mxu0 0.0
    %637 = vmatprep.subr.mxu0 0.0
    %638 = vmatpush1.msra.mxu0 0.0
    %639 = vmatprep.subr.mxu0 0.0
    %640 = vmatpush1.msra.mxu0 0.0
    %641 = vmatprep.subr.mxu0 0.0
    %642 = vmatpush1.msra.mxu0 0.0
    %643 = vmatprep.subr.mxu0 0.0
    %644 = vmatpush1.msra.mxu0 0.0
    %645 = vmatprep.subr.mxu0 0.0
    %646 = vmatpush1.msra.mxu0 0.0
    %647 = vmatprep.subr.mxu0 0.0
    %648 = vmatpush1.msra.mxu0 0.0
    %649 = vmatprep.subr.mxu0 0.0
    %650 = vmatpush1.msra.mxu0 0.0
    %651 = vmatprep.subr.mxu0 0.0
    %652 = vmatpush1.msra.mxu0 0.0
    %653 = vmatprep.subr.mxu0 0.0
    %654 = vmatpush1.msra.mxu0 0.0
    %655 = vmatprep.subr.mxu0 0.0
    %656 = vmatpush1.msra.mxu0 0.0
    %657 = vmatprep.subr.mxu0 0.0
    %658 = vmatpush1.msra.mxu0 0.0
    %659 = vmatprep.subr.mxu0 0.0
    %660 = vmatpush1.msra.mxu0 0.0
    %661 = vmatprep.subr.mxu0 0.0
    %662 = vmatpush1.msra.mxu0 0.0
    %663 = vmatprep.subr.mxu0 0.0
    %664 = vmatpush1.msra.mxu0 0.0
    %665 = vmatprep.subr.mxu0 0.0
    %666 = vmatpush1.msra.mxu0 0.0
    %667 = vmatprep.subr.mxu0 0.0
    %668 = vmatpush1.msra.mxu0 0.0
    %669 = vmatprep.subr.mxu0 0.0
    %670 = vmatpush1.msra.mxu0 0.0
    %671 = vmatprep.subr.mxu0 0.0
    %672 = vmatpush1.msra.mxu0 0.0
    %673 = vmatprep.subr.mxu0 0.0
    %674 = vmatpush1.msra.mxu0 0.0
    %675 = vmatprep.subr.mxu0 0.0
    %676 = vmatpush1.msra.mxu0 0.0
    %677 = vmatprep.subr.mxu0 0.0
    %678 = vmatpush1.msra.mxu0 0.0
    %679 = vmatprep.subr.mxu0 0.0
    %680 = vmatpush1.msra.mxu0 0.0
    %681 = vmatprep.subr.mxu0 0.0
    %682 = vmatpush1.msra.mxu0 0.0
    %683 = vmatprep.subr.mxu0 0.0
    %684 = vmatpush1.msra.mxu0 0.0
    %685 = vmatprep.subr.mxu0 0.0
    %686 = vmatpush1.msra.mxu0 0.0
    %687 = vmatprep.subr.mxu0 0.0
    %688 = vmatpush1.msra.mxu0 0.0
    %689 = vmatprep.subr.mxu0 0.0
    %690 = vmatpush1.msra.mxu0 0.0
    %691 = vmatprep.mubr.f32.mxu0 0.0
    %692 = vmatmul.mubr.f32.gmra.mrb[0].mxu0 %v622
    %v693 = vpop.f32.mrb[0].mxu0
    %v694 = vadd.f32 0.0, %v693
    %v695 = vpop.f32.mrb[0].mxu0
    %696 = vmatprep.mubr.f32.mxu0 0.0
    %697 = vmatmul.mubr.f32.gmra.mrb[0].mxu0 %v625
    %v698 = vpop.f32.mrb[0].mxu0
    %v699 = vadd.f32 0.0, %v698
    %v700 = vpop.f32.mrb[0].mxu0
    %701 = vdwg.mxu0
    %v703 = vsel %vm546, %v617, 0
    %v706 = vsel %vm546, %v618, 0
    %708 = vmatprep.subr.mxu0 0.0
    %709 = vmatpush1.msra.mxu0 %v124
    %710 = vmatprep.subr.mxu0 0.0
    %711 = vmatpush1.msra.mxu0 %v129
    %712 = vmatprep.subr.mxu0 0.0
    %713 = vmatpush1.msra.mxu0 0.0
    %714 = vmatprep.subr.mxu0 0.0
    %715 = vmatpush1.msra.mxu0 0.0
    %716 = vmatprep.subr.mxu0 0.0
    %717 = vmatpush1.msra.mxu0 0.0
    %718 = vmatprep.subr.mxu0 0.0
    %719 = vmatpush1.msra.mxu0 0.0
    %720 = vmatprep.subr.mxu0 0.0
    %721 = vmatpush1.msra.mxu0 0.0
    %722 = vmatprep.subr.mxu0 0.0
    %723 = vmatpush1.msra.mxu0 0.0
    %724 = vmatprep.subr.mxu0 0.0
    %725 = vmatpush1.msra.mxu0 0.0
    %726 = vmatprep.subr.mxu0 0.0
    %727 = vmatpush1.msra.mxu0 0.0
    %728 = vmatprep.subr.mxu0 0.0
    %729 = vmatpush1.msra.mxu0 0.0
    %730 = vmatprep.subr.mxu0 0.0
    %731 = vmatpush1.msra.mxu0 0.0
    %732 = vmatprep.subr.mxu0 0.0
    %733 = vmatpush1.msra.mxu0 0.0
    %734 = vmatprep.subr.mxu0 0.0
    %735 = vmatpush1.msra.mxu0 0.0
    %736 = vmatprep.subr.mxu0 0.0
    %737 = vmatpush1.msra.mxu0 0.0
    %738 = vmatprep.subr.mxu0 0.0
    %739 = vmatpush1.msra.mxu0 0.0
    %740 = vmatprep.subr.mxu0 0.0
    %741 = vmatpush1.msra.mxu0 0.0
    %742 = vmatprep.subr.mxu0 0.0
    %743 = vmatpush1.msra.mxu0 0.0
    %744 = vmatprep.subr.mxu0 0.0
    %745 = vmatpush1.msra.mxu0 0.0
    %746 = vmatprep.subr.mxu0 0.0
    %747 = vmatpush1.msra.mxu0 0.0
    %748 = vmatprep.subr.mxu0 0.0
    %749 = vmatpush1.msra.mxu0 0.0
    %750 = vmatprep.subr.mxu0 0.0
    %751 = vmatpush1.msra.mxu0 0.0
    %752 = vmatprep.subr.mxu0 0.0
    %753 = vmatpush1.msra.mxu0 0.0
    %754 = vmatprep.subr.mxu0 0.0
    %755 = vmatpush1.msra.mxu0 0.0
    %756 = vmatprep.subr.mxu0 0.0
    %757 = vmatpush1.msra.mxu0 0.0
    %758 = vmatprep.subr.mxu0 0.0
    %759 = vmatpush1.msra.mxu0 0.0
    %760 = vmatprep.subr.mxu0 0.0
    %761 = vmatpush1.msra.mxu0 0.0
    %762 = vmatprep.subr.mxu0 0.0
    %763 = vmatpush1.msra.mxu0 0.0
    %764 = vmatprep.subr.mxu0 0.0
    %765 = vmatpush1.msra.mxu0 0.0
    %766 = vmatprep.subr.mxu0 0.0
    %767 = vmatpush1.msra.mxu0 0.0
    %768 = vmatprep.subr.mxu0 0.0
    %769 = vmatpush1.msra.mxu0 0.0
    %770 = vmatprep.subr.mxu0 0.0
    %771 = vmatpush1.msra.mxu0 0.0
    %772 = vmatprep.mubr.f32.mxu0 0.0
    %773 = vmatmul.mubr.f32.gmra.mrb[0].mxu0 %v703
    %v774 = vpop.f32.mrb[0].mxu0
    %v775 = vadd.f32 0.0, %v774
    %v776 = vpop.f32.mrb[0].mxu0
    %777 = vmatprep.mubr.f32.mxu0 0.0
    %778 = vmatmul.mubr.f32.gmra.mrb[0].mxu0 %v706
    %v779 = vpop.f32.mrb[0].mxu0
    %v780 = vadd.f32 0.0, %v779
    %v781 = vpop.f32.mrb[0].mxu0
    %782 = vdwg.mxu0
    %v784 = vsel %vm546, %v619, 0
    %v787 = vsel %vm546, %v620, 0
    %789 = vmatprep.subr.mxu0 0.0
    %790 = vmatpush1.msra.mxu0 %v134
    %791 = vmatprep.subr.mxu0 0.0
    %792 = vmatpush1.msra.mxu0 %v139
    %793 = vmatprep.subr.mxu0 0.0
    %794 = vmatpush1.msra.mxu0 0.0
    %795 = vmatprep.subr.mxu0 0.0
    %796 = vmatpush1.msra.mxu0 0.0
    %797 = vmatprep.subr.mxu0 0.0
    %798 = vmatpush1.msra.mxu0 0.0
    %799 = vmatprep.subr.mxu0 0.0
    %800 = vmatpush1.msra.mxu0 0.0
    %801 = vmatprep.subr.mxu0 0.0
    %802 = vmatpush1.msra.mxu0 0.0
    %803 = vmatprep.subr.mxu0 0.0
    %804 = vmatpush1.msra.mxu0 0.0
    %805 = vmatprep.subr.mxu0 0.0
    %806 = vmatpush1.msra.mxu0 0.0
    %807 = vmatprep.subr.mxu0 0.0
    %808 = vmatpush1.msra.mxu0 0.0
    %809 = vmatprep.subr.mxu0 0.0
    %810 = vmatpush1.msra.mxu0 0.0
    %811 = vmatprep.subr.mxu0 0.0
    %812 = vmatpush1.msra.mxu0 0.0
    %813 = vmatprep.subr.mxu0 0.0
    %814 = vmatpush1.msra.mxu0 0.0
    %815 = vmatprep.subr.mxu0 0.0
    %816 = vmatpush1.msra.mxu0 0.0
    %817 = vmatprep.subr.mxu0 0.0
    %818 = vmatpush1.msra.mxu0 0.0
    %819 = vmatprep.subr.mxu0 0.0
    %820 = vmatpush1.msra.mxu0 0.0
    %821 = vmatprep.subr.mxu0 0.0
    %822 = vmatpush1.msra.mxu0 0.0
    %823 = vmatprep.subr.mxu0 0.0
    %824 = vmatpush1.msra.mxu0 0.0
    %825 = vmatprep.subr.mxu0 0.0
    %826 = vmatpush1.msra.mxu0 0.0
    %827 = vmatprep.subr.mxu0 0.0
    %828 = vmatpush1.msra.mxu0 0.0
    %829 = vmatprep.subr.mxu0 0.0
    %830 = vmatpush1.msra.mxu0 0.0
    %831 = vmatprep.subr.mxu0 0.0
    %832 = vmatpush1.msra.mxu0 0.0
    %833 = vmatprep.subr.mxu0 0.0
    %834 = vmatpush1.msra.mxu0 0.0
    %835 = vmatprep.subr.mxu0 0.0
    %836 = vmatpush1.msra.mxu0 0.0
    %837 = vmatprep.subr.mxu0 0.0
    %838 = vmatpush1.msra.mxu0 0.0
    %839 = vmatprep.subr.mxu0 0.0
    %840 = vmatpush1.msra.mxu0 0.0
    %841 = vmatprep.subr.mxu0 0.0
    %842 = vmatpush1.msra.mxu0 0.0
    %843 = vmatprep.subr.mxu0 0.0
    %844 = vmatpush1.msra.mxu0 0.0
    %845 = vmatprep.subr.mxu0 0.0
    %846 = vmatpush1.msra.mxu0 0.0
    %847 = vmatprep.subr.mxu0 0.0
    %848 = vmatpush1.msra.mxu0 0.0
    %849 = vmatprep.subr.mxu0 0.0
    %850 = vmatpush1.msra.mxu0 0.0
    %851 = vmatprep.subr.mxu0 0.0
    %852 = vmatpush1.msra.mxu0 0.0
    %853 = vmatprep.mubr.f32.mxu0 0.0
    %854 = vmatmul.mubr.f32.gmra.mrb[0].mxu0 %v784
    %v855 = vpop.f32.mrb[0].mxu0
    %v856 = vadd.f32 0.0, %v855
    %v857 = vpop.f32.mrb[0].mxu0
    %858 = vmatprep.mubr.f32.mxu0 0.0
    %859 = vmatmul.mubr.f32.gmra.mrb[0].mxu0 %v787
    %v860 = vpop.f32.mrb[0].mxu0
    %v861 = vadd.f32 0.0, %v860
    %v862 = vpop.f32.mrb[0].mxu0
    %863 = vdwg.mxu0
    %v864 = vld [vmem:[%s4] sm:$0xff]
    %v865 = vld [vmem:[%s4 + $0x8] sm:$0xff]
    %v866 = vld [vmem:[%s4 + $0x10] sm:$0xff]
    %v867 = vld [vmem:[%s4 + $0x18] sm:$0xff]
    %v869 = vsel %vm146, %v694, 0
    %v872 = vsel %vm146, %v699, 0
    %v875 = vsel %vm146, %v775, 0
    %v878 = vsel %vm146, %v780, 0
    %v881 = vsel %vm146, %v856, 0
    %v884 = vsel %vm146, %v861, 0
    %886 = vmatprep.subr.mxu0 0.0
    %887 = vmatpush1.msra.mxu0 %v864
    %888 = vmatprep.subr.mxu0 0.0
    %889 = vmatpush1.msra.mxu0 %v865
    %890 = vmatprep.subr.mxu0 0.0
    %891 = vmatpush1.msra.mxu0 %v866
    %892 = vmatprep.subr.mxu0 0.0
    %893 = vmatpush1.msra.mxu0 %v867
    %894 = vmatprep.subr.mxu0 0.0
    %895 = vmatpush1.msra.mxu0 0.0
    %896 = vmatprep.subr.mxu0 0.0
    %897 = vmatpush1.msra.mxu0 0.0
    %898 = vmatprep.subr.mxu0 0.0
    %899 = vmatpush1.msra.mxu0 0.0
    %900 = vmatprep.subr.mxu0 0.0
    %901 = vmatpush1.msra.mxu0 0.0
    %902 = vmatprep.subr.mxu0 0.0
    %903 = vmatpush1.msra.mxu0 0.0
    %904 = vmatprep.subr.mxu0 0.0
    %905 = vmatpush1.msra.mxu0 0.0
    %906 = vmatprep.subr.mxu0 0.0
    %907 = vmatpush1.msra.mxu0 0.0
    %908 = vmatprep.subr.mxu0 0.0
    %909 = vmatpush1.msra.mxu0 0.0
    %910 = vmatprep.subr.mxu0 0.0
    %911 = vmatpush1.msra.mxu0 0.0
    %912 = vmatprep.subr.mxu0 0.0
    %913 = vmatpush1.msra.mxu0 0.0
    %914 = vmatprep.subr.mxu0 0.0
    %915 = vmatpush1.msra.mxu0 0.0
    %916 = vmatprep.subr.mxu0 0.0
    %917 = vmatpush1.msra.mxu0 0.0
    %918 = vmatprep.subr.mxu0 0.0
    %919 = vmatpush1.msra.mxu0 0.0
    %920 = vmatprep.subr.mxu0 0.0
    %921 = vmatpush1.msra.mxu0 0.0
    %922 = vmatprep.subr.mxu0 0.0
    %923 = vmatpush1.msra.mxu0 0.0
    %924 = vmatprep.subr.mxu0 0.0
    %925 = vmatpush1.msra.mxu0 0.0
    %926 = vmatprep.subr.mxu0 0.0
    %927 = vmatpush1.msra.mxu0 0.0
    %928 = vmatprep.subr.mxu0 0.0
    %929 = vmatpush1.msra.mxu0 0.0
    %930 = vmatprep.subr.mxu0 0.0
    %931 = vmatpush1.msra.mxu0 0.0
    %932 = vmatprep.subr.mxu0 0.0
    %933 = vmatpush1.msra.mxu0 0.0
    %934 = vmatprep.subr.mxu0 0.0
    %935 = vmatpush1.msra.mxu0 0.0
    %936 = vmatprep.subr.mxu0 0.0
    %937 = vmatpush1.msra.mxu0 0.0
    %938 = vmatprep.subr.mxu0 0.0
    %939 = vmatpush1.msra.mxu0 0.0
    %940 = vmatprep.subr.mxu0 0.0
    %941 = vmatpush1.msra.mxu0 0.0
    %942 = vmatprep.subr.mxu0 0.0
    %943 = vmatpush1.msra.mxu0 0.0
    %944 = vmatprep.subr.mxu0 0.0
    %945 = vmatpush1.msra.mxu0 0.0
    %946 = vmatprep.subr.mxu0 0.0
    %947 = vmatpush1.msra.mxu0 0.0
    %948 = vmatprep.subr.mxu0 0.0
    %949 = vmatpush1.msra.mxu0 0.0
    %950 = vmatprep.mubr.f32.mxu0 0.0
    %951 = vmatmul.mubr.f32.gmra.mrb[0].mxu0 %v869
    %v952 = vpop.f32.mrb[0].mxu0
    %v953 = vadd.f32 0.0, %v952
    %v954 = vpop.f32.mrb[0].mxu0
    %955 = vmatprep.mubr.f32.mxu0 0.0
    %956 = vmatmul.mubr.f32.gmra.mrb[0].mxu0 %v872
    %v957 = vpop.f32.mrb[0].mxu0
    %v958 = vadd.f32 0.0, %v957
    %v959 = vpop.f32.mrb[0].mxu0
    %960 = vmatprep.mubr.f32.mxu0 0.0
    %961 = vmatmul.mubr.f32.gmra.mrb[0].mxu0 %v875
    %v962 = vpop.f32.mrb[0].mxu0
    %v963 = vadd.f32 0.0, %v962
    %v964 = vpop.f32.mrb[0].mxu0
    %965 = vmatprep.mubr.f32.mxu0 0.0
    %966 = vmatmul.mubr.f32.gmra.mrb[0].mxu0 %v878
    %v967 = vpop.f32.mrb[0].mxu0
    %v968 = vadd.f32 0.0, %v967
    %v969 = vpop.f32.mrb[0].mxu0
    %970 = vmatprep.mubr.f32.mxu0 0.0
    %971 = vmatmul.mubr.f32.gmra.mrb[0].mxu0 %v881
    %v972 = vpop.f32.mrb[0].mxu0
    %v973 = vadd.f32 0.0, %v972
    %v974 = vpop.f32.mrb[0].mxu0
    %975 = vmatprep.mubr.f32.mxu0 0.0
    %976 = vmatmul.mubr.f32.gmra.mrb[0].mxu0 %v884
    %v977 = vpop.f32.mrb[0].mxu0
    %v978 = vadd.f32 0.0, %v977
    %v979 = vpop.f32.mrb[0].mxu0
    %980 = vdwg.mxu0
    %981 = vst.msk [vmem:[#allocation2] sm:$0xff] %vm146, %v953
    %982 = vst.msk [vmem:[#allocation2 + $0x8] sm:$0xff] %vm146, %v958
    %983 = vst.msk [vmem:[#allocation2 + $0x10] sm:$0xff] %vm146, %v963
    %984 = vst.msk [vmem:[#allocation2 + $0x18] sm:$0xff] %vm146, %v968
    %985 = vst.msk [vmem:[#allocation2 + $0x20] sm:$0xff] %vm146, %v973
    %986 = vst.msk [vmem:[#allocation2 + $0x28] sm:$0xff] %vm146, %v978
    // Predicated region
    $region22: #{tpu_custom_call.1} parent=1 // pred_check
      _
    $region23: #{tpu_custom_call.1} parent=1 // pred_check_branch
      %988 = sbr.rel (0) target = $region25
    $region24: #{tpu_custom_call.1} parent=1 // pred_region
      %s990 = ssub.s32 768, 768
      %991 = vsyncadd [#allocation3], %s990
      %s992 = sshll.u32 [#allocation2], 4
      %s993 = int_to_ptr.vmem [resolvable:$true] %s992
      %998 = dma.vmem_to_hbm [thread:$0]  %s993, 768, %s5, [#allocation3], 128, 128, 8
    $region25: #{tpu_custom_call.1} parent=1 // pred_fallthru
      _
    // Predicated region
    $region26: #{tpu_custom_call.1} parent=1 // pred_check
      _
    $region27: #{tpu_custom_call.1} parent=1 // pred_check_branch
      %1000 = sbr.rel (0) target = $region29
    $region28: #{tpu_custom_call.1} parent=1 // pred_region
      %1001 = dma.done [#allocation3], 768
    $region29: #{tpu_custom_call.1} parent=1 // pred_fallthru
      _
    %1002 = vsyncpa [#allocation3], 1

</llo_original>
